<compile_context>
chip_gen: v7x
topology: tpu7x:2x2x1
jax: 0.10.0
libtpu: 0.0.40
codegen_flags: <defaults>
</compile_context>

<pallas_src>
import jax
import jax.numpy as jnp
from jax.experimental import pallas as pl
from jax.experimental.pallas import tpu as pltpu


# ---------------------------------------------------------------------------
# Small helpers
# ---------------------------------------------------------------------------

def _prod(xs):
    out = 1
    for v in xs:
        out *= v
    return out


def _cdiv(a, b):
    return -(-a // b)


def _rup(n, m):
    return _cdiv(n, m) * m


def _sublane_mult(itemsize):
    # Packed-sublane multiple: 8 for 32-bit, 16 for bf16, 32 for int8/fp8.
    return max(8, 32 // max(itemsize, 1))


def _padded_bytes(block_shape, itemsize):
    # Real VMEM footprint of one block: last dim padded to the 128-lane vreg
    # width, second-minor padded to the packed-sublane multiple.
    dims = list(block_shape)
    dims[-1] = _rup(dims[-1], 128)
    if len(dims) >= 2:
        dims[-2] = _rup(dims[-2], _sublane_mult(itemsize))
    return _prod(dims) * itemsize


def _vmem_budget():
    # Per-block budget derived from the chip's real VMEM so the pipeline
    # footprint (double-buffered input + output blocks) stays well under
    # capacity on every generation (v5e/v6e: 128 MiB, v7x: 64 MiB).
    try:
        cap = int(pltpu.get_tpu_info().vmem_capacity_bytes)
    except Exception:  # conservative (v7x-sized) default
        cap = 64 * 1024 * 1024
    budget = max(1 << 20, min(4 << 20, cap // 16))
    return budget, cap


def _compiler_params(n_grid_axes, vmem_cap, footprint):
    vmem_limit = min(3 * vmem_cap // 4, footprint + (16 << 20))
    vmem_limit = max(vmem_limit, footprint + (2 << 20))
    return pltpu.CompilerParams(
        dimension_semantics=("parallel",) * n_grid_axes,
        vmem_limit_bytes=int(vmem_limit))


def _cost(nbytes):
    # Pure data movement: no flops, ~2x the array in HBM traffic.
    return pl.CostEstimate(flops=0, transcendentals=0, bytes_accessed=2 * nbytes)


# ---------------------------------------------------------------------------
# Kernels
# ---------------------------------------------------------------------------

def _transpose_kernel(x_ref, o_ref):
    # (tp, tu, tv) -> (tp, tv, tu): (batched) transpose of the two minor dims.
    if x_ref.shape[0] == 1:
        o_ref[0] = x_ref[0].T
    else:
        o_ref[...] = jnp.swapaxes(x_ref[...], 1, 2)


def _swap_mid_kernel(x_ref, o_ref):
    # (tp, tu, tv, tq) -> (tp, tv, tu, tq): swap the two middle (non-lane)
    # axes; the trailing tq block stays minor-most / lane-resident.
    if x_ref.shape[0] == 1:
        o_ref[0] = jnp.swapaxes(x_ref[0], 0, 1)
    else:
        o_ref[...] = jnp.swapaxes(x_ref[...], 1, 2)


# ---------------------------------------------------------------------------
# Q == 1 path: batched 2-D transpose (P, U, V) -> (P, V, U)
# ---------------------------------------------------------------------------

def _move_axis_q1(x3, out_shape):
    P, U, V = x3.shape
    itemsize = x3.dtype.itemsize
    budget, vmem_cap = _vmem_budget()

    # Transposed dims appear as a sublane block on one side and a lane block
    # on the other, so a partial tile must be a multiple of 128; the cap is
    # derived from the per-block VMEM budget (dtype aware: 1024 f32, 1408
    # bf16, 2048 int8 at a 4 MiB budget).
    cap = int((budget // itemsize) ** 0.5) // 128 * 128
    cap = max(128, min(2048, cap))
    tu = U if U <= cap else cap
    tv = V if V <= cap else cap

    def blk_bytes(tp_, tu_, tv_):
        return max(_padded_bytes((tp_, tu_, tv_), itemsize),
                   _padded_bytes((tp_, tv_, tu_), itemsize))

    # Rarely needed: only when a "full" dim pads past the budget.
    while blk_bytes(1, tu, tv) > budget and max(tu, tv) > 128:
        if tv >= tu:
            tv = max(128, _rup(_cdiv(tv, 2), 128))
        else:
            tu = max(128, _rup(_cdiv(tu, 2), 128))

    # Batch the leading P dim so small transposed extents still produce
    # MiB-scale blocks (amortizes the ~0.35 us per grid step).
    tp = max(1, min(P, budget // max(blk_bytes(1, tu, tv), 1)))

    # Keep >= 2 grid steps for mid/large arrays so both v7x TensorCores work.
    if (_cdiv(P, tp) * _cdiv(U, tu) * _cdiv(V, tv) == 1
            and x3.size * itemsize >= (2 << 20)):
        if P >= 2:
            tp = _cdiv(P, 2)
        elif U >= V and U > 128:
            tu = _rup(_cdiv(U, 2), 128)
        elif V > 128:
            tv = _rup(_cdiv(V, 2), 128)

    # U-tiles innermost: consecutive steps advance the OUTPUT along its
    # minor (contiguous) dimension -> sequential output DMA.
    grid = (_cdiv(P, tp), _cdiv(V, tv), _cdiv(U, tu))
    footprint = 2 * (_padded_bytes((tp, tu, tv), itemsize)
                     + _padded_bytes((tp, tv, tu), itemsize))

    y3 = pl.pallas_call(
        _transpose_kernel,
        out_shape=jax.ShapeDtypeStruct((P, V, U), x3.dtype),
        grid_spec=pltpu.PrefetchScalarGridSpec(
            num_scalar_prefetch=0,
            grid=grid,
            in_specs=[pl.BlockSpec((tp, tu, tv), lambda p, j, i: (p, i, j))],
            out_specs=pl.BlockSpec((tp, tv, tu), lambda p, j, i: (p, j, i)),
        ),
        compiler_params=_compiler_params(3, vmem_cap, footprint),
        cost_estimate=_cost(x3.size * itemsize),
    )(x3)
    return y3.reshape(out_shape)


# ---------------------------------------------------------------------------
# General path: (P, U, V, Q) -> (P, V, U, Q), Q stays minor-most on both sides
# ---------------------------------------------------------------------------

def _move_axis_general(x4, out_shape):
    P, U, V, Q = x4.shape
    itemsize = x4.dtype.itemsize
    budget, vmem_cap = _vmem_budget()
    sub = _sublane_mult(itemsize)

    tu, tv, tq, tp = U, V, Q, 1

    def blk_bytes(tp_, tu_, tv_, tq_):
        return max(_padded_bytes((tp_, tu_, tv_, tq_), itemsize),
                   _padded_bytes((tp_, tv_, tu_, tq_), itemsize))

    # Tile U and V (multiples of the packed-sublane count, or the full dim)
    # and, only if still necessary, Q (multiples of 128 lanes) until the
    # PADDED block fits the per-block budget — this bounds the pipeline's
    # VMEM footprint on every chip generation.
    while blk_bytes(1, tu, tv, tq) > budget:
        if tv >= tu and tv > sub:
            tv = max(sub, _rup(_cdiv(tv, 2), sub))
        elif tu > sub:
            tu = max(sub, _rup(_cdiv(tu, 2), sub))
        elif tq > 128:
            tq = max(128, _rup(_cdiv(tq, 2), 128))
        else:
            break

    # Batch P when the whole (U, V, Q) slab is small.
    tp = max(1, min(P, budget // max(blk_bytes(1, tu, tv, tq), 1)))

    # Keep >= 2 grid steps for mid/large arrays (v7x megacore).
    if (_cdiv(P, tp) * _cdiv(V, tv) * _cdiv(U, tu) * _cdiv(Q, tq) == 1
            and x4.size * itemsize >= (2 << 20)):
        if P >= 2:
            tp = _cdiv(P, 2)
        elif max(U, V) > sub:
            if U >= V:
                tu = _rup(_cdiv(U, 2), sub)
            else:
                tv = _rup(_cdiv(V, 2), sub)
        elif Q > 128:
            tq = _rup(_cdiv(Q, 2), 128)

    # Q-tiles innermost, then U-tiles: output writeback stays as sequential
    # as the layout permits.
    grid = (_cdiv(P, tp), _cdiv(V, tv), _cdiv(U, tu), _cdiv(Q, tq))
    footprint = 2 * (_padded_bytes((tp, tu, tv, tq), itemsize)
                     + _padded_bytes((tp, tv, tu, tq), itemsize))

    y4 = pl.pallas_call(
        _swap_mid_kernel,
        out_shape=jax.ShapeDtypeStruct((P, V, U, Q), x4.dtype),
        grid_spec=pltpu.PrefetchScalarGridSpec(
            num_scalar_prefetch=0,
            grid=grid,
            in_specs=[pl.BlockSpec((tp, tu, tv, tq),
                                   lambda p, j, i, k: (p, i, j, k))],
            out_specs=pl.BlockSpec((tp, tv, tu, tq),
                                   lambda p, j, i, k: (p, j, i, k)),
        ),
        compiler_params=_compiler_params(4, vmem_cap, footprint),
        cost_estimate=_cost(x4.size * itemsize),
    )(x4)
    return y4.reshape(out_shape)


# ---------------------------------------------------------------------------
# Wrapper
# ---------------------------------------------------------------------------

def move_axis(x, source, destination):
    """Pallas TPU implementation of torch.moveaxis(x, source, destination)."""
    n = x.ndim
    s = source % n
    t = destination % n
    if s == t:
        return x

    shape = x.shape
    if s < t:
        # (pre..., A, mid..., post...) -> (pre..., mid..., A, post...)
        P = _prod(shape[:s])
        U = shape[s]                        # moved axis
        V = _prod(shape[s + 1:t + 1])       # block it jumps over
        Q = _prod(shape[t + 1:])            # trailing block (stays minor-most)
        out_shape = shape[:s] + shape[s + 1:t + 1] + (shape[s],) + shape[t + 1:]
    else:
        # (pre..., mid..., A, post...) -> (pre..., A, mid..., post...)
        P = _prod(shape[:t])
        U = _prod(shape[t:s])               # block the axis jumps over
        V = shape[s]                        # moved axis
        Q = _prod(shape[s + 1:])
        out_shape = shape[:t] + (shape[s],) + shape[t:s] + shape[s + 1:]

    # Degenerate moves are pure (free) row-major reshapes — no kernel needed.
    if x.size == 0 or U == 1 or V == 1:
        return x.reshape(out_shape)

    if Q == 1:
        return _move_axis_q1(x.reshape(P, U, V), out_shape)
    return _move_axis_general(x.reshape(P, U, V, Q), out_shape)


class MoveAxis:
    """Pallas-backed equivalent of the PyTorch Move_Axis module."""

    def __init__(self, source, destination):
        self.source = source
        self.destination = destination

    def __call__(self, x):
        return move_axis(x, self.source, self.destination)


Move_Axis = MoveAxis  # name alias matching the PyTorch module


if __name__ == "__main__":
    key = jax.random.PRNGKey(0)
    x = jax.random.normal(key, (2, 4, 16, 16), dtype=jnp.float32)

    checks = [
        # (array, source, destination)
        (x, 1, -1),   # NCHW -> NHWC               (Q == 1 path, P-batched)
        (x, -1, 0),   # minor axis to the front    (Q == 1 path, tp == 1)
        (x, 1, 2),    # swap of two middle axes    (general 4-D path)
        (jax.random.normal(key, (2100, 256), dtype=jnp.float32), 0, 1),
                      # 2-D transpose with partial (masked) transposed tiles
        (jax.random.normal(key, (8, 4, 16, 16), dtype=jnp.bfloat16), -1, 1),
                      # sub-32-bit dtype, P-batched transpose
    ]

    for xi, src, dst in checks:
        y = jax.block_until_ready(MoveAxis(src, dst)(xi))
        y_ref = jnp.moveaxis(xi, src, dst)
        assert y.shape == y_ref.shape, (y.shape, y_ref.shape)
        assert jnp.array_equal(y, y_ref), (xi.shape, xi.dtype, src, dst)

    print("KERNEL_OK")
</pallas_src>

<mosaic_0001>
module attributes {stable_mosaic.version = 11 : i64} {
  func.func @_transpose_kernel(%arg0: i32, %arg1: i32, %arg2: i32, %arg3: memref<2x4x256xf32, #tpu.memory_space<vmem>>, %arg4: memref<2x256x4xf32, #tpu.memory_space<vmem>>) attributes {dimension_semantics = [#tpu.dimension_semantics<parallel>, #tpu.dimension_semantics<parallel>, #tpu.dimension_semantics<parallel>], iteration_bounds = array<i64: 1, 1, 1>, scalar_prefetch = 0 : i64, scratch_operands = 0 : i64, tpu.core_type = #tpu.core_type<tc>, window_params = [{transform_indices = @transform_0, window_bounds = array<i64: 2, 4, 256>}, {transform_indices = @transform_1, window_bounds = array<i64: 2, 256, 4>}]} {
    %c0 = arith.constant 0 : index
    %c0_0 = arith.constant 0 : index
    %c0_1 = arith.constant 0 : index
    %0 = vector.load %arg3[%c0, %c0_0, %c0_1] : memref<2x4x256xf32, #tpu.memory_space<vmem>>, vector<2x4x256xf32>
    %1 = tpu.transpose %0, [0, 2, 1] : vector<2x4x256xf32> -> vector<2x256x4xf32>
    %c0_2 = arith.constant 0 : index
    %c0_3 = arith.constant 0 : index
    %c0_4 = arith.constant 0 : index
    %2 = vector.load %arg4[%c0_2, %c0_3, %c0_4] : memref<2x256x4xf32, #tpu.memory_space<vmem>>, vector<2x256x4xf32>
    tpu.vector_store %arg4[%c0_2, %c0_3, %c0_4], %1 {strides = array<i32>} : memref<2x256x4xf32, #tpu.memory_space<vmem>>, vector<2x256x4xf32>,
    return
  }
  func.func @transform_0(%arg0: i32, %arg1: i32, %arg2: i32) -> (i32, i32, i32) {
    %c0_i32 = arith.constant 0 : i32
    return %arg0, %arg2, %arg1 : i32, i32, i32
  }
  func.func @transform_1(%arg0: i32, %arg1: i32, %arg2: i32) -> (i32, i32, i32) {
    %c0_i32 = arith.constant 0 : i32
    return %arg0, %arg1, %arg2 : i32, i32, i32
  }
}

</mosaic_0001>

<llo_original>
// kernel: tpu_custom_call.1
$region0: #{tpu_custom_call.1}
  #allocation0 [shape = 'u32[]', space=smem, size = 0x4, offset = 0x4, fixed_abs, tag = 'smem constant byte address 0x4 - core index']
  #allocation1 [shape = 'u32[144,128]{1,0:T(1,128)}', space=vmem, size = 0x12000, scoped, tag = 'internal scratch']
  %s0 = inlined_call_operand.hbm [shape: f32[2,4,256], index: 0, kind: input, shape index: {}]
  %s1 = inlined_call_operand.vmem [shape: f32[2,256,4], index: 1, kind: output, shape index: {}]
  %s2 = sld [smem:[#allocation0]]
  $region18: #{tpu_custom_call.1} parent=0
    _
  %s4 = ssub.s32 1, %s2
  %s5 = scalar_select 0, %s4, %s2
  $region1: #{tpu_custom_call.1} parent=0
    #allocation2 [shape = 'u8[8192]{0}', space=vmem, size = 0x2000, scoped, tag = 'input window, operand 0, single buffered']
    #allocation3 [shape = 's32[1]{0}', space=sflag, size = 0x4, scoped, tag = 'scoped memory for tpu_custom_call.1']
    %6 = vsyncpa [#allocation3], 0
    // Predicated region
    $region2: #{tpu_custom_call.1} parent=1 // pred_check
      _
    $region3: #{tpu_custom_call.1} parent=1 // pred_check_branch
      %8 = sbr.rel (0) target = $region5
    $region4: #{tpu_custom_call.1} parent=1 // pred_region
      %s10 = ssub.s32 256, 256
      %11 = vsyncadd [#allocation3], %s10
      %s12 = sshll.u32 [#allocation2], 4
      %s13 = int_to_ptr.vmem [resolvable:$true] %s12
      %18 = dma.hbm_to_vmem [thread:$0]  %s0, 256, %s13, [#allocation3], 128, 128, 8
    $region5: #{tpu_custom_call.1} parent=1 // pred_fallthru
      _
    // Predicated region
    $region6: #{tpu_custom_call.1} parent=1 // pred_check
      _
    $region7: #{tpu_custom_call.1} parent=1 // pred_check_branch
      %20 = sbr.rel (0) target = $region9
    $region8: #{tpu_custom_call.1} parent=1 // pred_region
      %21 = dma.done [#allocation3], 256
    $region9: #{tpu_custom_call.1} parent=1 // pred_fallthru
      _
    %v22 = vld [vmem:[#allocation2] sm:$0xff]
    %v23 = vld [vmem:[#allocation2 + $0x8] sm:$0xff]
    %v26 = vcombine.high %v22, %v22
    %v27 = vcombine.high %v23, %v23
    %30 = vxpose.xlu0.b32.start [1/16] %v22, 128
    %31 = vxpose.xlu0.b32.cont [2/16] 0.0, 128
    %32 = vxpose.xlu0.b32.cont [3/16] 0.0, 128
    %33 = vxpose.xlu0.b32.cont [4/16] 0.0, 128
    %34 = vxpose.xlu0.b32.cont [5/16] 0.0, 128
    %35 = vxpose.xlu0.b32.cont [6/16] 0.0, 128
    %36 = vxpose.xlu0.b32.cont [7/16] 0.0, 128
    %37 = vxpose.xlu0.b32.cont [8/16] 0.0, 128
    %38 = vxpose.xlu0.b32.cont [9/16] 0.0, 128
    %39 = vxpose.xlu0.b32.cont [10/16] 0.0, 128
    %40 = vxpose.xlu0.b32.cont [11/16] 0.0, 128
    %41 = vxpose.xlu0.b32.cont [12/16] 0.0, 128
    %42 = vxpose.xlu0.b32.cont [13/16] 0.0, 128
    %43 = vxpose.xlu0.b32.cont [14/16] 0.0, 128
    %44 = vxpose.xlu0.b32.cont [15/16] 0.0, 128
    %45 = vxpose.xlu0.b32.end [16/16] 0.0, 128
    %v46 = vpop.trf.xlu0
    %v47 = vpop.trf.xlu0
    %v48 = vpop.trf.xlu0
    %v49 = vpop.trf.xlu0
    %v50 = vpop.trf.xlu0
    %v51 = vpop.trf.xlu0
    %v52 = vpop.trf.xlu0
    %v53 = vpop.trf.xlu0
    %v54 = vpop.trf.xlu0
    %v55 = vpop.trf.xlu0
    %v56 = vpop.trf.xlu0
    %v57 = vpop.trf.xlu0
    %v58 = vpop.trf.xlu0
    %v59 = vpop.trf.xlu0
    %v60 = vpop.trf.xlu0
    %v61 = vpop.trf.xlu0
    %62 = vxpose.xlu0.b32.start [1/16] %v26, 128
    %63 = vxpose.xlu0.b32.cont [2/16] 0.0, 128
    %64 = vxpose.xlu0.b32.cont [3/16] 0.0, 128
    %65 = vxpose.xlu0.b32.cont [4/16] 0.0, 128
    %66 = vxpose.xlu0.b32.cont [5/16] 0.0, 128
    %67 = vxpose.xlu0.b32.cont [6/16] 0.0, 128
    %68 = vxpose.xlu0.b32.cont [7/16] 0.0, 128
    %69 = vxpose.xlu0.b32.cont [8/16] 0.0, 128
    %70 = vxpose.xlu0.b32.cont [9/16] 0.0, 128
    %71 = vxpose.xlu0.b32.cont [10/16] 0.0, 128
    %72 = vxpose.xlu0.b32.cont [11/16] 0.0, 128
    %73 = vxpose.xlu0.b32.cont [12/16] 0.0, 128
    %74 = vxpose.xlu0.b32.cont [13/16] 0.0, 128
    %75 = vxpose.xlu0.b32.cont [14/16] 0.0, 128
    %76 = vxpose.xlu0.b32.cont [15/16] 0.0, 128
    %77 = vxpose.xlu0.b32.end [16/16] 0.0, 128
    %v78 = vpop.trf.xlu0
    %v79 = vpop.trf.xlu0
    %v80 = vpop.trf.xlu0
    %v81 = vpop.trf.xlu0
    %v82 = vpop.trf.xlu0
    %v83 = vpop.trf.xlu0
    %v84 = vpop.trf.xlu0
    %v85 = vpop.trf.xlu0
    %v86 = vpop.trf.xlu0
    %v87 = vpop.trf.xlu0
    %v88 = vpop.trf.xlu0
    %v89 = vpop.trf.xlu0
    %v90 = vpop.trf.xlu0
    %v91 = vpop.trf.xlu0
    %v92 = vpop.trf.xlu0
    %v93 = vpop.trf.xlu0
    %94 = vxpose.xlu0.b32.start [1/16] %v23, 128
    %95 = vxpose.xlu0.b32.cont [2/16] 0.0, 128
    %96 = vxpose.xlu0.b32.cont [3/16] 0.0, 128
    %97 = vxpose.xlu0.b32.cont [4/16] 0.0, 128
    %98 = vxpose.xlu0.b32.cont [5/16] 0.0, 128
    %99 = vxpose.xlu0.b32.cont [6/16] 0.0, 128
    %100 = vxpose.xlu0.b32.cont [7/16] 0.0, 128
    %101 = vxpose.xlu0.b32.cont [8/16] 0.0, 128
    %102 = vxpose.xlu0.b32.cont [9/16] 0.0, 128
    %103 = vxpose.xlu0.b32.cont [10/16] 0.0, 128
    %104 = vxpose.xlu0.b32.cont [11/16] 0.0, 128
    %105 = vxpose.xlu0.b32.cont [12/16] 0.0, 128
    %106 = vxpose.xlu0.b32.cont [13/16] 0.0, 128
    %107 = vxpose.xlu0.b32.cont [14/16] 0.0, 128
    %108 = vxpose.xlu0.b32.cont [15/16] 0.0, 128
    %109 = vxpose.xlu0.b32.end [16/16] 0.0, 128
    %v110 = vpop.trf.xlu0
    %v111 = vpop.trf.xlu0
    %v112 = vpop.trf.xlu0
    %v113 = vpop.trf.xlu0
    %v114 = vpop.trf.xlu0
    %v115 = vpop.trf.xlu0
    %v116 = vpop.trf.xlu0
    %v117 = vpop.trf.xlu0
    %v118 = vpop.trf.xlu0
    %v119 = vpop.trf.xlu0
    %v120 = vpop.trf.xlu0
    %v121 = vpop.trf.xlu0
    %v122 = vpop.trf.xlu0
    %v123 = vpop.trf.xlu0
    %v124 = vpop.trf.xlu0
    %v125 = vpop.trf.xlu0
    %126 = vxpose.xlu0.b32.start [1/16] %v27, 128
    %127 = vxpose.xlu0.b32.cont [2/16] 0.0, 128
    %128 = vxpose.xlu0.b32.cont [3/16] 0.0, 128
    %129 = vxpose.xlu0.b32.cont [4/16] 0.0, 128
    %130 = vxpose.xlu0.b32.cont [5/16] 0.0, 128
    %131 = vxpose.xlu0.b32.cont [6/16] 0.0, 128
    %132 = vxpose.xlu0.b32.cont [7/16] 0.0, 128
    %133 = vxpose.xlu0.b32.cont [8/16] 0.0, 128
    %134 = vxpose.xlu0.b32.cont [9/16] 0.0, 128
    %135 = vxpose.xlu0.b32.cont [10/16] 0.0, 128
    %136 = vxpose.xlu0.b32.cont [11/16] 0.0, 128
    %137 = vxpose.xlu0.b32.cont [12/16] 0.0, 128
    %138 = vxpose.xlu0.b32.cont [13/16] 0.0, 128
    %139 = vxpose.xlu0.b32.cont [14/16] 0.0, 128
    %140 = vxpose.xlu0.b32.cont [15/16] 0.0, 128
    %141 = vxpose.xlu0.b32.end [16/16] 0.0, 128
    %v142 = vpop.trf.xlu0
    %v143 = vpop.trf.xlu0
    %v144 = vpop.trf.xlu0
    %v145 = vpop.trf.xlu0
    %v146 = vpop.trf.xlu0
    %v147 = vpop.trf.xlu0
    %v148 = vpop.trf.xlu0
    %v149 = vpop.trf.xlu0
    %v150 = vpop.trf.xlu0
    %v151 = vpop.trf.xlu0
    %v152 = vpop.trf.xlu0
    %v153 = vpop.trf.xlu0
    %v154 = vpop.trf.xlu0
    %v155 = vpop.trf.xlu0
    %v156 = vpop.trf.xlu0
    %v157 = vpop.trf.xlu0
    %vm158 = vcmask 31744
    %159 = vst.msk [vmem:[%s1] sm:$0xff] %vm158, %v46
    %160 = vst.msk [vmem:[%s1 + $0x8] sm:$0xff] %vm158, %v47
    %161 = vst.msk [vmem:[%s1 + $0x10] sm:$0xff] %vm158, %v48
    %162 = vst.msk [vmem:[%s1 + $0x18] sm:$0xff] %vm158, %v49
    %163 = vst.msk [vmem:[%s1 + $0x20] sm:$0xff] %vm158, %v50
    %164 = vst.msk [vmem:[%s1 + $0x28] sm:$0xff] %vm158, %v51
    %165 = vst.msk [vmem:[%s1 + $0x30] sm:$0xff] %vm158, %v52
    %166 = vst.msk [vmem:[%s1 + $0x38] sm:$0xff] %vm158, %v53
    %167 = vst.msk [vmem:[%s1 + $0x40] sm:$0xff] %vm158, %v54
    %168 = vst.msk [vmem:[%s1 + $0x48] sm:$0xff] %vm158, %v55
    %169 = vst.msk [vmem:[%s1 + $0x50] sm:$0xff] %vm158, %v56
    %170 = vst.msk [vmem:[%s1 + $0x58] sm:$0xff] %vm158, %v57
    %171 = vst.msk [vmem:[%s1 + $0x60] sm:$0xff] %vm158, %v58
    %172 = vst.msk [vmem:[%s1 + $0x68] sm:$0xff] %vm158, %v59
    %173 = vst.msk [vmem:[%s1 + $0x70] sm:$0xff] %vm158, %v60
    %174 = vst.msk [vmem:[%s1 + $0x78] sm:$0xff] %vm158, %v61
    %175 = vst.msk [vmem:[%s1 + $0x80] sm:$0xff] %vm158, %v78
    %176 = vst.msk [vmem:[%s1 + $0x88] sm:$0xff] %vm158, %v79
    %177 = vst.msk [vmem:[%s1 + $0x90] sm:$0xff] %vm158, %v80
    %178 = vst.msk [vmem:[%s1 + $0x98] sm:$0xff] %vm158, %v81
    %179 = vst.msk [vmem:[%s1 + $0xa0] sm:$0xff] %vm158, %v82
    %180 = vst.msk [vmem:[%s1 + $0xa8] sm:$0xff] %vm158, %v83
    %181 = vst.msk [vmem:[%s1 + $0xb0] sm:$0xff] %vm158, %v84
    %182 = vst.msk [vmem:[%s1 + $0xb8] sm:$0xff] %vm158, %v85
    %183 = vst.msk [vmem:[%s1 + $0xc0] sm:$0xff] %vm158, %v86
    %184 = vst.msk [vmem:[%s1 + $0xc8] sm:$0xff] %vm158, %v87
    %185 = vst.msk [vmem:[%s1 + $0xd0] sm:$0xff] %vm158, %v88
    %186 = vst.msk [vmem:[%s1 + $0xd8] sm:$0xff] %vm158, %v89
    %187 = vst.msk [vmem:[%s1 + $0xe0] sm:$0xff] %vm158, %v90
    %188 = vst.msk [vmem:[%s1 + $0xe8] sm:$0xff] %vm158, %v91
    %189 = vst.msk [vmem:[%s1 + $0xf0] sm:$0xff] %vm158, %v92
    %190 = vst.msk [vmem:[%s1 + $0xf8] sm:$0xff] %vm158, %v93
    %191 = vst.msk [vmem:[%s1 + $0x100] sm:$0xff] %vm158, %v110
    %192 = vst.msk [vmem:[%s1 + $0x108] sm:$0xff] %vm158, %v111
    %193 = vst.msk [vmem:[%s1 + $0x110] sm:$0xff] %vm158, %v112
    %194 = vst.msk [vmem:[%s1 + $0x118] sm:$0xff] %vm158, %v113
    %195 = vst.msk [vmem:[%s1 + $0x120] sm:$0xff] %vm158, %v114
    %196 = vst.msk [vmem:[%s1 + $0x128] sm:$0xff] %vm158, %v115
    %197 = vst.msk [vmem:[%s1 + $0x130] sm:$0xff] %vm158, %v116
    %198 = vst.msk [vmem:[%s1 + $0x138] sm:$0xff] %vm158, %v117
    %199 = vst.msk [vmem:[%s1 + $0x140] sm:$0xff] %vm158, %v118
    %200 = vst.msk [vmem:[%s1 + $0x148] sm:$0xff] %vm158, %v119
    %201 = vst.msk [vmem:[%s1 + $0x150] sm:$0xff] %vm158, %v120
    %202 = vst.msk [vmem:[%s1 + $0x158] sm:$0xff] %vm158, %v121
    %203 = vst.msk [vmem:[%s1 + $0x160] sm:$0xff] %vm158, %v122
    %204 = vst.msk [vmem:[%s1 + $0x168] sm:$0xff] %vm158, %v123
    %205 = vst.msk [vmem:[%s1 + $0x170] sm:$0xff] %vm158, %v124
    %206 = vst.msk [vmem:[%s1 + $0x178] sm:$0xff] %vm158, %v125
    %207 = vst.msk [vmem:[%s1 + $0x180] sm:$0xff] %vm158, %v142
    %208 = vst.msk [vmem:[%s1 + $0x188] sm:$0xff] %vm158, %v143
    %209 = vst.msk [vmem:[%s1 + $0x190] sm:$0xff] %vm158, %v144
    %210 = vst.msk [vmem:[%s1 + $0x198] sm:$0xff] %vm158, %v145
    %211 = vst.msk [vmem:[%s1 + $0x1a0] sm:$0xff] %vm158, %v146
    %212 = vst.msk [vmem:[%s1 + $0x1a8] sm:$0xff] %vm158, %v147
    %213 = vst.msk [vmem:[%s1 + $0x1b0] sm:$0xff] %vm158, %v148
    %214 = vst.msk [vmem:[%s1 + $0x1b8] sm:$0xff] %vm158, %v149
    %215 = vst.msk [vmem:[%s1 + $0x1c0] sm:$0xff] %vm158, %v150
    %216 = vst.msk [vmem:[%s1 + $0x1c8] sm:$0xff] %vm158, %v151
    %217 = vst.msk [vmem:[%s1 + $0x1d0] sm:$0xff] %vm158, %v152
    %218 = vst.msk [vmem:[%s1 + $0x1d8] sm:$0xff] %vm158, %v153
    %219 = vst.msk [vmem:[%s1 + $0x1e0] sm:$0xff] %vm158, %v154
    %220 = vst.msk [vmem:[%s1 + $0x1e8] sm:$0xff] %vm158, %v155
    %221 = vst.msk [vmem:[%s1 + $0x1f0] sm:$0xff] %vm158, %v156
    %222 = vst.msk [vmem:[%s1 + $0x1f8] sm:$0xff] %vm158, %v157
    // Predicated region
    $region10: #{tpu_custom_call.1} parent=1 // pred_check
      _
    $region11: #{tpu_custom_call.1} parent=1 // pred_check_branch
      %224 = sbr.rel (0) target = $region13
    $region12: #{tpu_custom_call.1} parent=1 // pred_region
      _
    $region13: #{tpu_custom_call.1} parent=1 // pred_fallthru
      _
    // Predicated region
    $region14: #{tpu_custom_call.1} parent=1 // pred_check
      _
    $region15: #{tpu_custom_call.1} parent=1 // pred_check_branch
      %226 = sbr.rel (0) target = $region17
    $region16: #{tpu_custom_call.1} parent=1 // pred_region
      _
    $region17: #{tpu_custom_call.1} parent=1 // pred_fallthru
      _
    %227 = vsyncpa [#allocation3], 1

</llo_original>
